<compile_context>
chip_gen: v7x
topology: tpu7x:2x2x1
jax: 0.10.0
libtpu: 0.0.40
codegen_flags: <defaults>
</compile_context>

<pallas_src>
import functools
import math

import jax
import jax.numpy as jnp
from jax import lax
from jax.experimental import pallas as pl
from jax.experimental.pallas import tpu as pltpu


# ----------------------------------------------------------------------------
# EqualizedConv2d  (stride-1 conv; inv_c = sqrt(2/(c_in*k^2)) folded into w;
# fused leaky_relu; whole batch in one lane-dense MXU dot)
# ----------------------------------------------------------------------------
def _eq_conv_kernel(x_ref, w_ref, b_ref, o_ref, *, n, k, wp, L, slope):
    """x_ref: (n, c_in, hp*wp + (k-1))  bf16, spatially padded, HW lane-flattened
       w_ref: (c_out, k*k*c_in)         bf16, weight * inv_c, rows ordered (kh,kw,c)
       b_ref: (c_out, 1)                f32
       o_ref: (n, c_out, L)             f32, L = h_out*wp (junk cols cropped
                                        in the wrapper)"""
    imgs = [x_ref[i] for i in range(n)]                # n loads of (c_in, Wf)
    if k == 1:
        cols = [xi[:, :L] for xi in imgs]
        patches = cols[0] if n == 1 else jnp.concatenate(cols, axis=1)
    else:
        tap_rows = []
        for kh in range(k):
            for kw in range(k):
                s = kh * wp + kw                       # pure lane shift per tap
                row = [xi[:, s:s + L] for xi in imgs]
                tap_rows.append(row[0] if n == 1 else jnp.concatenate(row, axis=1))
        patches = jnp.concatenate(tap_rows, axis=0)    # (k*k*c_in, n*L)
    # One im2col dot for the whole batch, f32 accumulate.
    acc = jnp.dot(w_ref[...], patches, preferred_element_type=jnp.float32)
    acc = acc + b_ref[...]                             # (c_out,1) bcast over lanes
    if slope is not None:                              # fused leaky_relu (one vmax)
        acc = jnp.maximum(acc, slope * acc)
    acc = acc.astype(o_ref.dtype)
    for i in range(n):
        o_ref[i] = acc[:, i * L:(i + 1) * L]


def equalized_conv2d(x, weight, bias, *, stride=1, pad=0, slope=None):
    """y = Conv2d(w, b, stride, pad)(sqrt(2/(c_in*k^2)) * x)  [+ fused leaky_relu]."""
    n, c_in, h, w = x.shape
    c_out, c_in_w, k, k2 = weight.shape
    assert c_in_w == c_in and k == k2
    if stride != 1:
        # TODO(synk): stride>1 via wrapper-side space-to-depth; the Discriminator
        # only uses stride-1 convolutions so it is not needed here.
        raise NotImplementedError("equalized_conv2d: only stride=1 is implemented")

    inv_c = math.sqrt(2.0 / (c_in * k * k))
    hp, wp = h + 2 * pad, w + 2 * pad
    h_out, w_out = hp - k + 1, wp - k + 1
    L = h_out * wp                       # per-image slab: full rows incl. junk cols

    # Glue: spatial pad + flatten HW onto the lane axis + (k-1) extra zero lanes
    # so every tap slice of length L stays in bounds; bf16 matmul operands.
    x_p = jnp.pad(x.astype(jnp.float32), ((0, 0), (0, 0), (pad, pad), (pad, pad)))
    x_flat = x_p.reshape(n, c_in, hp * wp)
    if k > 1:
        x_flat = jnp.pad(x_flat, ((0, 0), (0, 0), (0, k - 1)))
    x_flat = x_flat.astype(jnp.bfloat16)
    Wf = x_flat.shape[-1]

    w_r = (weight.astype(jnp.float32) * inv_c).transpose(0, 2, 3, 1)
    w_r = w_r.reshape(c_out, k * k * c_in).astype(jnp.bfloat16)
    b_r = bias.astype(jnp.float32).reshape(c_out, 1)

    kernel = functools.partial(_eq_conv_kernel, n=n, k=k, wp=wp, L=L, slope=slope)

    out = pl.pallas_call(
        kernel,
        out_shape=jax.ShapeDtypeStruct((n, c_out, L), jnp.float32),
        grid=(1,),
        in_specs=[
            pl.BlockSpec((n, c_in, Wf), lambda i: (0, 0, 0)),
            pl.BlockSpec((c_out, k * k * c_in), lambda i: (0, 0)),
            pl.BlockSpec((c_out, 1), lambda i: (0, 0)),
        ],
        out_specs=pl.BlockSpec((n, c_out, L), lambda i: (0, 0, 0)),
    )(x_flat, w_r, b_r)

    # Column j of each image slab is padded-grid position (j // wp, j % wp);
    # drop the wp - w_out junk columns (free reshape when pad == 0, k == 1).
    out = out.reshape(n, c_out, h_out, wp)
    if w_out != wp:
        out = out[:, :, :, :w_out]
    return out


# ----------------------------------------------------------------------------
# Fused head: out1 (4x4 conv over the whole 4x4 map == linear) + leaky_relu
#             + out2 EqualizedLinear, one pallas_call, two chained MXU dots.
# ----------------------------------------------------------------------------
def _head_kernel(x_ref, w1_ref, b1_ref, w2_ref, b2_ref, o_ref, *, slope):
    h = jnp.dot(x_ref[...], w1_ref[...], preferred_element_type=jnp.float32)
    h = h + b1_ref[...]
    h = jnp.maximum(h, slope * h)                      # leaky_relu
    y = jnp.dot(h.astype(w2_ref.dtype), w2_ref[...],
                preferred_element_type=jnp.float32) + b2_ref[...]
    o_ref[...] = y.astype(o_ref.dtype)


def discriminator_head(h, p_out1, p_out2, *, slope):
    n, c_in, hh, ww = h.shape
    w1, b1 = p_out1["w"], p_out1["b"]
    w2, b2 = p_out2["w"], p_out2["b"]
    c_mid = w1.shape[0]
    out_ch = w2.shape[0]
    assert w1.shape[2] == hh and w1.shape[3] == ww and p_out1["pad"] == 0
    inv1 = math.sqrt(2.0 / (c_in * hh * ww))
    inv2 = math.sqrt(2.0 / c_mid)
    d_in = c_in * hh * ww

    x_r = h.reshape(n, d_in).astype(jnp.bfloat16)
    w1_r = (w1.astype(jnp.float32) * inv1).reshape(c_mid, d_in).T.astype(jnp.bfloat16)
    b1_r = b1.astype(jnp.float32).reshape(1, c_mid)
    w2_r = (w2.astype(jnp.float32) * inv2).T.astype(jnp.bfloat16)     # (c_mid, out)
    b2_r = b2.astype(jnp.float32).reshape(1, out_ch)

    return pl.pallas_call(
        functools.partial(_head_kernel, slope=slope),
        out_shape=jax.ShapeDtypeStruct((n, out_ch), jnp.float32),
        grid=(1,),
        in_specs=[
            pl.BlockSpec((n, d_in), lambda i: (0, 0)),
            pl.BlockSpec((d_in, c_mid), lambda i: (0, 0)),
            pl.BlockSpec((1, c_mid), lambda i: (0, 0)),
            pl.BlockSpec((c_mid, out_ch), lambda i: (0, 0)),
            pl.BlockSpec((1, out_ch), lambda i: (0, 0)),
        ],
        out_specs=pl.BlockSpec((n, out_ch), lambda i: (0, 0)),
    )(x_r, w1_r, b1_r, w2_r, b2_r)


# ----------------------------------------------------------------------------
# JAX glue: avg_pool2d(2,2), minibatch_std  (cheap elementwise/reduce ops)
# ----------------------------------------------------------------------------
def avg_pool_2x2(x):
    n, c, h, w = x.shape
    return x.reshape(n, c, h // 2, 2, w // 2, 2).mean(axis=(3, 5))


def minibatch_std(x):
    std = jnp.std(x, axis=0)                 # population std (unbiased=False)
    mean_std = jnp.mean(std)
    feat = jnp.broadcast_to(mean_std, (x.shape[0], 1, x.shape[2], x.shape[3]))
    return jnp.concatenate([x, feat.astype(x.dtype)], axis=1)


# ----------------------------------------------------------------------------
# Discriminator: params + forward (mirrors the PyTorch control flow; stage is
# a static Python number).  conv_fn/head_fn are injected so the exact same
# forward runs both the Pallas path and the XLA reference path.
# ----------------------------------------------------------------------------
def init_discriminator_params(key, ndf=16):
    params = {}
    keys = iter(jax.random.split(key, 64))

    def conv(name, in_ch, out_ch, k, stride, pad):
        kw_, kb_ = jax.random.split(next(keys))
        w = jax.random.normal(kw_, (out_ch, in_ch, k, k), jnp.float32)   # init.normal(0,1)
        bound = 1.0 / math.sqrt(in_ch * k * k)                           # Conv2d default bias
        b = jax.random.uniform(kb_, (out_ch,), jnp.float32, -bound, bound)
        params[name] = dict(w=w, b=b, stride=stride, pad=pad)

    conv("in6", 3, ndf // 2, 1, 1, 0)
    conv("b6.c0", ndf // 2, ndf // 2, 3, 1, 1)
    conv("b6.c1", ndf // 2, ndf, 3, 1, 1)
    for i in range(5, -1, -1):
        conv("in%d" % i, 3, ndf, 1, 1, 0)
    for i in range(5, 0, -1):
        conv("b%d.c0" % i, ndf, ndf, 3, 1, 1)
        conv("b%d.c1" % i, ndf, ndf, 3, 1, 1)
    conv("out0", ndf + 1, ndf, 3, 1, 1)
    conv("out1", ndf, ndf, 4, 1, 0)
    kl = next(keys)
    params["out2"] = dict(w=jax.random.normal(kl, (1, ndf), jnp.float32),  # init.normal(0,1)
                          b=jnp.zeros((1,), jnp.float32))                  # init.constant(0)
    return params


def discriminator_forward(params, x, stage, *, conv_fn, head_fn,
                          max_stage=12, pooling_comp=1.0):
    slope = 0.01                                  # F.leaky_relu default
    stage = min(float(stage), float(max_stage))
    alpha = stage - math.floor(stage)
    stage = int(math.floor(stage))
    staged2 = stage // 2
    staged2p1 = stage // 2 + 1

    def eq_conv(name, h):                         # every conv is followed by leaky_relu
        p = params[name]
        return conv_fn(h, p["w"], p["b"], stride=p["stride"], pad=p["pad"], slope=slope)

    def block(idx, h):                            # DiscriminatorBlock
        h = eq_conv("b%d.c0" % idx, h)
        h = eq_conv("b%d.c1" % idx, h)
        return pooling_comp * avg_pool_2x2(h)

    if stage % 2 == 0:
        h = eq_conv("in%d" % staged2, x)
    else:                                         # fade-in between resolutions
        h0 = eq_conv("in%d" % staged2, pooling_comp * avg_pool_2x2(x))
        h1 = block(staged2p1, eq_conv("in%d" % staged2p1, x))
        h = (1.0 - alpha) * h0 + alpha * h1
    for i in range(staged2, 0, -1):
        h = block(i, h)
    h = minibatch_std(h)
    h = eq_conv("out0", h)
    return head_fn(h, params["out1"], params["out2"], slope=slope)


def make_discriminator(params, stage, *, conv_fn, head_fn):
    fwd = functools.partial(discriminator_forward, params, stage=stage,
                            conv_fn=conv_fn, head_fn=head_fn)
    return jax.jit(fwd)


# ----------------------------------------------------------------------------
# Pure-XLA f32 reference (same forward, lax.conv / jnp.matmul instead of Pallas)
# ----------------------------------------------------------------------------
def ref_equalized_conv2d(x, weight, bias, *, stride=1, pad=0, slope=None):
    c_in, k = weight.shape[1], weight.shape[2]
    inv_c = math.sqrt(2.0 / (c_in * k * k))
    y = lax.conv_general_dilated(
        x * inv_c, weight, window_strides=(stride, stride),
        padding=[(pad, pad), (pad, pad)],
        dimension_numbers=("NCHW", "OIHW", "NCHW")) + bias.reshape(1, -1, 1, 1)
    if slope is not None:
        y = jnp.maximum(y, slope * y)
    return y


def ref_equalized_linear(x, weight, bias):
    inv_c = math.sqrt(2.0 / x.shape[1])
    return (x * inv_c) @ weight.T + bias


def ref_discriminator_head(h, p_out1, p_out2, *, slope):
    y = ref_equalized_conv2d(h, p_out1["w"], p_out1["b"],
                             stride=p_out1["stride"], pad=p_out1["pad"], slope=slope)
    y = y.reshape(y.shape[0], y.shape[1])
    return ref_equalized_linear(y, p_out2["w"], p_out2["b"])


# ----------------------------------------------------------------------------
if __name__ == "__main__":
    key = jax.random.PRNGKey(0)
    k_params, k_x2, k_x35, k_xc, k_wc, k_bc = jax.random.split(key, 6)

    # ---- 1) unit check: one EqualizedConv2d vs the XLA f32 conv reference --
    # (Pallas path uses bf16 matmul operands w/ f32 accumulate -> loose tol.)
    in_ch, out_ch, ksize = 4, 8, 3
    xc = jax.random.normal(k_xc, (2, in_ch, 16, 16), jnp.float32)
    wc = jax.random.normal(k_wc, (out_ch, in_ch, ksize, ksize), jnp.float32)
    bound = 1.0 / math.sqrt(in_ch * ksize * ksize)
    bc = jax.random.uniform(k_bc, (out_ch,), jnp.float32, -bound, bound)

    got = jax.block_until_ready(equalized_conv2d(xc, wc, bc, stride=1, pad=1))
    want = ref_equalized_conv2d(xc, wc, bc, stride=1, pad=1)
    assert got.shape == (2, out_ch, 16, 16)
    assert jnp.allclose(got, want, atol=5e-2, rtol=5e-2), "conv kernel mismatch"

    # ---- 2) full Discriminator forward (small ndf) --------------------------
    ndf = 16
    params = init_discriminator_params(k_params, ndf=ndf)

    # even stage (2): in1 -> b1 -> minibatch_std -> out0 -> fused out1/out2 head
    x2 = jax.random.normal(k_x2, (2, 3, 8, 8), jnp.float32)
    d2_pallas = make_discriminator(params, 2.0, conv_fn=equalized_conv2d,
                                   head_fn=discriminator_head)
    d2_ref = make_discriminator(params, 2.0, conv_fn=ref_equalized_conv2d,
                                head_fn=ref_discriminator_head)
    y2 = jax.block_until_ready(d2_pallas(x2))
    y2_ref = d2_ref(x2)
    assert y2.shape == (2, 1)
    assert jnp.allclose(y2, y2_ref, atol=1e-1, rtol=5e-2), "stage-2 forward mismatch"

    # odd / fade-in stage (3.5): blend in1(pool(x)) with b2(in2(x)), then b1
    x35 = jax.random.normal(k_x35, (2, 3, 16, 16), jnp.float32)
    d35_pallas = make_discriminator(params, 3.5, conv_fn=equalized_conv2d,
                                    head_fn=discriminator_head)
    d35_ref = make_discriminator(params, 3.5, conv_fn=ref_equalized_conv2d,
                                 head_fn=ref_discriminator_head)
    y35 = jax.block_until_ready(d35_pallas(x35))
    y35_ref = d35_ref(x35)
    assert y35.shape == (2, 1)
    assert jnp.allclose(y35, y35_ref, atol=1e-1, rtol=5e-2), "stage-3.5 forward mismatch"

    print("KERNEL_OK")
</pallas_src>

<mosaic_0001>
module attributes {stable_mosaic.version = 11 : i64} {
  func.func @_eq_conv_kernel(%arg0: i32, %arg1: memref<2x4x326xbf16, #tpu.memory_space<vmem>>, %arg2: memref<8x36xbf16, #tpu.memory_space<vmem>>, %arg3: memref<8x1xf32, #tpu.memory_space<vmem>>, %arg4: memref<2x8x288xf32, #tpu.memory_space<vmem>>) attributes {dimension_semantics = [#tpu.dimension_semantics<arbitrary>], iteration_bounds = array<i64: 1>, scalar_prefetch = 0 : i64, scratch_operands = 0 : i64, tpu.core_type = #tpu.core_type<tc>, window_params = [{pipeline_mode = #tpu.pipeline_mode<synchronous>, transform_indices = @transform_0, window_bounds = array<i64: 2, 4, 326>}, {pipeline_mode = #tpu.pipeline_mode<synchronous>, transform_indices = @transform_1, window_bounds = array<i64: 8, 36>}, {pipeline_mode = #tpu.pipeline_mode<synchronous>, transform_indices = @transform_2, window_bounds = array<i64: 8, 1>}, {pipeline_mode = #tpu.pipeline_mode<synchronous>, transform_indices = @transform_3, window_bounds = array<i64: 2, 8, 288>}]} {
    %c0 = arith.constant 0 : index
    %c0_0 = arith.constant 0 : index
    %c0_1 = arith.constant 0 : index
    %0 = vector.load %arg1[%c0, %c0_0, %c0_1] : memref<2x4x326xbf16, #tpu.memory_space<vmem>>, vector<1x4x326xbf16>
    %1 = vector.shape_cast %0 : vector<1x4x326xbf16> to vector<4x326xbf16>
    %c1 = arith.constant 1 : index
    %c0_2 = arith.constant 0 : index
    %c0_3 = arith.constant 0 : index
    %2 = vector.load %arg1[%c1, %c0_2, %c0_3] : memref<2x4x326xbf16, #tpu.memory_space<vmem>>, vector<1x4x326xbf16>
    %3 = vector.shape_cast %2 : vector<1x4x326xbf16> to vector<4x326xbf16>
    %4 = vector.extract_strided_slice %1 {offsets = [0, 0], sizes = [4, 288], strides = [1, 1]} : vector<4x326xbf16> to vector<4x288xbf16>
    %5 = vector.extract_strided_slice %3 {offsets = [0, 0], sizes = [4, 288], strides = [1, 1]} : vector<4x326xbf16> to vector<4x288xbf16>
    %6 = tpu.concatenate %4, %5 in 1 : vector<4x288xbf16>, vector<4x288xbf16> -> vector<4x576xbf16>
    %7 = vector.extract_strided_slice %1 {offsets = [0, 1], sizes = [4, 288], strides = [1, 1]} : vector<4x326xbf16> to vector<4x288xbf16>
    %8 = vector.extract_strided_slice %3 {offsets = [0, 1], sizes = [4, 288], strides = [1, 1]} : vector<4x326xbf16> to vector<4x288xbf16>
    %9 = tpu.concatenate %7, %8 in 1 : vector<4x288xbf16>, vector<4x288xbf16> -> vector<4x576xbf16>
    %10 = vector.extract_strided_slice %1 {offsets = [0, 2], sizes = [4, 288], strides = [1, 1]} : vector<4x326xbf16> to vector<4x288xbf16>
    %11 = vector.extract_strided_slice %3 {offsets = [0, 2], sizes = [4, 288], strides = [1, 1]} : vector<4x326xbf16> to vector<4x288xbf16>
    %12 = tpu.concatenate %10, %11 in 1 : vector<4x288xbf16>, vector<4x288xbf16> -> vector<4x576xbf16>
    %13 = vector.extract_strided_slice %1 {offsets = [0, 18], sizes = [4, 288], strides = [1, 1]} : vector<4x326xbf16> to vector<4x288xbf16>
    %14 = vector.extract_strided_slice %3 {offsets = [0, 18], sizes = [4, 288], strides = [1, 1]} : vector<4x326xbf16> to vector<4x288xbf16>
    %15 = tpu.concatenate %13, %14 in 1 : vector<4x288xbf16>, vector<4x288xbf16> -> vector<4x576xbf16>
    %16 = vector.extract_strided_slice %1 {offsets = [0, 19], sizes = [4, 288], strides = [1, 1]} : vector<4x326xbf16> to vector<4x288xbf16>
    %17 = vector.extract_strided_slice %3 {offsets = [0, 19], sizes = [4, 288], strides = [1, 1]} : vector<4x326xbf16> to vector<4x288xbf16>
    %18 = tpu.concatenate %16, %17 in 1 : vector<4x288xbf16>, vector<4x288xbf16> -> vector<4x576xbf16>
    %19 = vector.extract_strided_slice %1 {offsets = [0, 20], sizes = [4, 288], strides = [1, 1]} : vector<4x326xbf16> to vector<4x288xbf16>
    %20 = vector.extract_strided_slice %3 {offsets = [0, 20], sizes = [4, 288], strides = [1, 1]} : vector<4x326xbf16> to vector<4x288xbf16>
    %21 = tpu.concatenate %19, %20 in 1 : vector<4x288xbf16>, vector<4x288xbf16> -> vector<4x576xbf16>
    %22 = vector.extract_strided_slice %1 {offsets = [0, 36], sizes = [4, 288], strides = [1, 1]} : vector<4x326xbf16> to vector<4x288xbf16>
    %23 = vector.extract_strided_slice %3 {offsets = [0, 36], sizes = [4, 288], strides = [1, 1]} : vector<4x326xbf16> to vector<4x288xbf16>
    %24 = tpu.concatenate %22, %23 in 1 : vector<4x288xbf16>, vector<4x288xbf16> -> vector<4x576xbf16>
    %25 = vector.extract_strided_slice %1 {offsets = [0, 37], sizes = [4, 288], strides = [1, 1]} : vector<4x326xbf16> to vector<4x288xbf16>
    %26 = vector.extract_strided_slice %3 {offsets = [0, 37], sizes = [4, 288], strides = [1, 1]} : vector<4x326xbf16> to vector<4x288xbf16>
    %27 = tpu.concatenate %25, %26 in 1 : vector<4x288xbf16>, vector<4x288xbf16> -> vector<4x576xbf16>
    %28 = vector.extract_strided_slice %1 {offsets = [0, 38], sizes = [4, 288], strides = [1, 1]} : vector<4x326xbf16> to vector<4x288xbf16>
    %29 = vector.extract_strided_slice %3 {offsets = [0, 38], sizes = [4, 288], strides = [1, 1]} : vector<4x326xbf16> to vector<4x288xbf16>
    %30 = tpu.concatenate %28, %29 in 1 : vector<4x288xbf16>, vector<4x288xbf16> -> vector<4x576xbf16>
    %31 = tpu.concatenate %6, %9, %12, %15, %18, %21, %24, %27, %30 in 0 : vector<4x576xbf16>, vector<4x576xbf16>, vector<4x576xbf16>, vector<4x576xbf16>, vector<4x576xbf16>, vector<4x576xbf16>, vector<4x576xbf16>, vector<4x576xbf16>, vector<4x576xbf16> -> vector<36x576xbf16>
    %c0_4 = arith.constant 0 : index
    %c0_5 = arith.constant 0 : index
    %32 = vector.load %arg2[%c0_4, %c0_5] : memref<8x36xbf16, #tpu.memory_space<vmem>>, vector<8x36xbf16>
    %cst = arith.constant dense<0.000000e+00> : vector<8x576xf32>
    %33 = tpu.matmul %32, %31, %cst {dimension_numbers = #tpu.dot_dimension_numbers<[1], [0], [0], [1], [0, 0, 1, 1], [], []>} : vector<8x36xbf16>, vector<36x576xbf16>, vector<8x576xf32> -> vector<8x576xf32>
    %c0_6 = arith.constant 0 : index
    %c0_7 = arith.constant 0 : index
    %34 = vector.load %arg3[%c0_6, %c0_7] : memref<8x1xf32, #tpu.memory_space<vmem>>, vector<8x1xf32>
    %35 = vector.broadcast %34 : vector<8x1xf32> to vector<8x576xf32>
    %36 = arith.addf %33, %35 : vector<8x576xf32>
    %37 = vector.extract_strided_slice %36 {offsets = [0, 0], sizes = [8, 288], strides = [1, 1]} : vector<8x576xf32> to vector<8x288xf32>
    %c0_8 = arith.constant 0 : index
    %c0_9 = arith.constant 0 : index
    %c0_10 = arith.constant 0 : index
    %38 = vector.load %arg4[%c0_8, %c0_9, %c0_10] : memref<2x8x288xf32, #tpu.memory_space<vmem>>, vector<1x8x288xf32>
    %39 = vector.shape_cast %38 : vector<1x8x288xf32> to vector<8x288xf32>
    %40 = vector.shape_cast %37 : vector<8x288xf32> to vector<1x8x288xf32>
    tpu.vector_store %arg4[%c0_8, %c0_9, %c0_10], %40 {strides = array<i32>} : memref<2x8x288xf32, #tpu.memory_space<vmem>>, vector<1x8x288xf32>,
    %41 = vector.extract_strided_slice %36 {offsets = [0, 288], sizes = [8, 288], strides = [1, 1]} : vector<8x576xf32> to vector<8x288xf32>
    %c1_11 = arith.constant 1 : index
    %c0_12 = arith.constant 0 : index
    %c0_13 = arith.constant 0 : index
    %42 = vector.load %arg4[%c1_11, %c0_12, %c0_13] : memref<2x8x288xf32, #tpu.memory_space<vmem>>, vector<1x8x288xf32>
    %43 = vector.shape_cast %42 : vector<1x8x288xf32> to vector<8x288xf32>
    %44 = vector.shape_cast %41 : vector<8x288xf32> to vector<1x8x288xf32>
    tpu.vector_store %arg4[%c1_11, %c0_12, %c0_13], %44 {strides = array<i32>} : memref<2x8x288xf32, #tpu.memory_space<vmem>>, vector<1x8x288xf32>,
    return
  }
  func.func @transform_0(%arg0: i32) -> (i32, i32, i32) {
    %c0_i32 = arith.constant 0 : i32
    %c0_i32_0 = arith.constant 0 : i32
    %c0_i32_1 = arith.constant 0 : i32
    %c0_i32_2 = arith.constant 0 : i32
    return %c0_i32, %c0_i32_0, %c0_i32_1 : i32, i32, i32
  }
  func.func @transform_1(%arg0: i32) -> (i32, i32) {
    %c0_i32 = arith.constant 0 : i32
    %c0_i32_0 = arith.constant 0 : i32
    %c0_i32_1 = arith.constant 0 : i32
    return %c0_i32, %c0_i32_0 : i32, i32
  }
  func.func @transform_2(%arg0: i32) -> (i32, i32) {
    %c0_i32 = arith.constant 0 : i32
    %c0_i32_0 = arith.constant 0 : i32
    %c0_i32_1 = arith.constant 0 : i32
    return %c0_i32, %c0_i32_0 : i32, i32
  }
  func.func @transform_3(%arg0: i32) -> (i32, i32, i32) {
    %c0_i32 = arith.constant 0 : i32
    %c0_i32_0 = arith.constant 0 : i32
    %c0_i32_1 = arith.constant 0 : i32
    %c0_i32_2 = arith.constant 0 : i32
    return %c0_i32, %c0_i32_0, %c0_i32_1 : i32, i32, i32
  }
}

</mosaic_0001>

<llo_original>
// kernel: tpu_custom_call.1
$region0: #{tpu_custom_call.1}
  #allocation0 [shape = 'u32[]', space=smem, size = 0x4, offset = 0x4, fixed_abs, tag = 'smem constant byte address 0x4 - core index']
  #allocation1 [shape = 'u32[144,128]{1,0:T(1,128)}', space=vmem, size = 0x12000, scoped, tag = 'internal scratch']
  %s0 = inlined_call_operand.hbm [shape: bf16[2,4,326], index: 0, kind: input, shape index: {}]
  %s1 = inlined_call_operand.vmem [shape: bf16[8,36], index: 1, kind: input, shape index: {}]
  %s2 = inlined_call_operand.vmem [shape: f32[8,1], index: 2, kind: input, shape index: {}]
  %s3 = inlined_call_operand.hbm [shape: f32[2,8,288], index: 3, kind: output, shape index: {}]
  %s4 = sld [smem:[#allocation0]]
  $region26: #{tpu_custom_call.1} parent=0
    _
  %s6 = ssub.s32 1, %s4
  %s7 = scalar_select 0, %s6, %s4
  $region1: #{tpu_custom_call.1} parent=0
    #allocation2 [shape = 'u8[6144]{0}', space=vmem, size = 0x1800, scoped, tag = 'input window, operand 0, single buffered']
    #allocation3 [shape = 's32[1]{0}', space=sflag, size = 0x4, scoped, tag = 'scoped memory for tpu_custom_call.1']
    #allocation4 [shape = 's32[1]{0}', space=sflag, size = 0x4, scoped, tag = 'scoped memory for tpu_custom_call.1']
    #allocation5 [shape = 'u8[24576]{0}', space=vmem, size = 0x6000, scoped, tag = 'output window, operand 0, single buffered']
    %8 = vsyncpa [#allocation3], 0
    %9 = vsyncpa [#allocation4], 0
    // Predicated region
    $region2: #{tpu_custom_call.1} parent=1 // pred_check
      _
    $region3: #{tpu_custom_call.1} parent=1 // pred_check_branch
      %11 = sbr.rel (0) target = $region5
    $region4: #{tpu_custom_call.1} parent=1 // pred_region
      %s13 = ssub.s32 192, 192
      %14 = vsyncadd [#allocation3], %s13
      %s15 = sshll.u32 [#allocation2], 4
      %s16 = int_to_ptr.vmem [resolvable:$true] %s15
      %21 = dma.hbm_to_vmem [thread:$0]  %s0, 192, %s16, [#allocation3], 96, 96, 6
    $region5: #{tpu_custom_call.1} parent=1 // pred_fallthru
      _
    // Predicated region
    $region6: #{tpu_custom_call.1} parent=1 // pred_check
      _
    $region7: #{tpu_custom_call.1} parent=1 // pred_check_branch
      %23 = sbr.rel (0) target = $region9
    $region8: #{tpu_custom_call.1} parent=1 // pred_region
      _
    $region9: #{tpu_custom_call.1} parent=1 // pred_fallthru
      _
    // Predicated region
    $region10: #{tpu_custom_call.1} parent=1 // pred_check
      _
    $region11: #{tpu_custom_call.1} parent=1 // pred_check_branch
      %25 = sbr.rel (0) target = $region13
    $region12: #{tpu_custom_call.1} parent=1 // pred_region
      _
    $region13: #{tpu_custom_call.1} parent=1 // pred_fallthru
      _
    // Predicated region
    $region14: #{tpu_custom_call.1} parent=1 // pred_check
      _
    $region15: #{tpu_custom_call.1} parent=1 // pred_check_branch
      %27 = sbr.rel (0) target = $region17
    $region16: #{tpu_custom_call.1} parent=1 // pred_region
      %28 = dma.done [#allocation3], 192
    $region17: #{tpu_custom_call.1} parent=1 // pred_fallthru
      _
    %v30 = vld [vmem:[#allocation2] sm:$0x3f]
    %s31 = scalar_lea.vmem [#allocation2], 6
    %v32 = vld [vmem:[%s31] sm:$0x3f]
    %v34 = vcombine.high %v30, %v30
    %v36 = vunpack.c.l.s4 1983009808
    %v37 = vunpack.c.0.s8 %v36
    %v38 = vlaneseq
    %v39 = vshrl.u32 %v38, 7
    %v40 = vsub.s32 %v37, %v39
    %v41 = vrot.slane %v30, %v40
    %v43 = vunpack.c.l.s4 1983009808
    %v44 = vunpack.c.0.s8 %v43
    %v45 = vlaneseq
    %v46 = vshrl.u32 %v45, 7
    %v47 = vsub.s32 %v44, %v46
    %v48 = vrot.slane %v34, %v47
    %v49 = vcombine.high %v41, %v41
    %v51 = vcombine.high %v32, %v32
    %v53 = vunpack.c.l.s4 1983009808
    %v54 = vunpack.c.0.s8 %v53
    %v55 = vlaneseq
    %v56 = vshrl.u32 %v55, 7
    %v57 = vsub.s32 %v54, %v56
    %v58 = vrot.slane %v32, %v57
    %v60 = vunpack.c.l.s4 1983009808
    %v61 = vunpack.c.0.s8 %v60
    %v62 = vlaneseq
    %v63 = vshrl.u32 %v62, 7
    %v64 = vsub.s32 %v61, %v63
    %v65 = vrot.slane %v51, %v64
    %v66 = vcombine.high %v58, %v58
    %67 = vrot.lane.b32.xlu0 %v58, 32
    %v68 = vpop.permute.xlu0 %67
    %69 = vrot.lane.b32.xlu0 %v66, 32
    %v70 = vpop.permute.xlu0 %69
    %71 = vrot.lane.b32.xlu0 %v65, 32
    %v72 = vpop.permute.xlu0 %71
    %vm73 = vcmask 261120
    %v74 = vsel %vm73, %v68, %v70
    %v75 = vsel %vm73, %v70, %v72
    %vm76 = vcmask 261120
    %v79 = vsel %vm76, %v48, %v68
    %80 = vrot.lane.b32.xlu0 %v41, 127
    %v81 = vpop.permute.xlu0 %80
    %82 = vrot.lane.b32.xlu0 %v49, 127
    %v83 = vpop.permute.xlu0 %82
    %84 = vrot.lane.b32.xlu0 %v48, 127
    %v85 = vpop.permute.xlu0 %84
    %vm86 = vcmask 1039360
    %v87 = vsel %vm86, %v81, %v83
    %v88 = vsel %vm86, %v83, %v85
    %89 = vrot.lane.b32.xlu0 %v58, 31
    %v90 = vpop.permute.xlu0 %89
    %91 = vrot.lane.b32.xlu0 %v66, 31
    %v92 = vpop.permute.xlu0 %91
    %93 = vrot.lane.b32.xlu0 %v65, 31
    %v94 = vpop.permute.xlu0 %93
    %vm95 = vcmask 252928
    %v96 = vsel %vm95, %v90, %v92
    %v97 = vsel %vm95, %v92, %v94
    %v100 = vsel %vm76, %v85, %v90
    %101 = vrot.lane.b32.xlu0 %v41, 126
    %v102 = vpop.permute.xlu0 %101
    %103 = vrot.lane.b32.xlu0 %v49, 126
    %v104 = vpop.permute.xlu0 %103
    %105 = vrot.lane.b32.xlu0 %v48, 126
    %v106 = vpop.permute.xlu0 %105
    %vm107 = vcmask 1031168
    %v108 = vsel %vm107, %v102, %v104
    %v109 = vsel %vm107, %v104, %v106
    %110 = vrot.lane.b32.xlu0 %v58, 30
    %v111 = vpop.permute.xlu0 %110
    %112 = vrot.lane.b32.xlu0 %v66, 30
    %v113 = vpop.permute.xlu0 %112
    %114 = vrot.lane.b32.xlu0 %v65, 30
    %v115 = vpop.permute.xlu0 %114
    %vm116 = vcmask 244736
    %v117 = vsel %vm116, %v111, %v113
    %v118 = vsel %vm116, %v113, %v115
    %v121 = vsel %vm76, %v106, %v111
    %122 = vrot.lane.b32.xlu0 %v41, 110
    %v123 = vpop.permute.xlu0 %122
    %124 = vrot.lane.b32.xlu0 %v49, 110
    %v125 = vpop.permute.xlu0 %124
    %126 = vrot.lane.b32.xlu0 %v48, 110
    %v127 = vpop.permute.xlu0 %126
    %vm128 = vcmask 900096
    %v129 = vsel %vm128, %v123, %v125
    %v130 = vsel %vm128, %v125, %v127
    %131 = vrot.lane.b32.xlu0 %v58, 14
    %v132 = vpop.permute.xlu0 %131
    %133 = vrot.lane.b32.xlu0 %v66, 14
    %v134 = vpop.permute.xlu0 %133
    %135 = vrot.lane.b32.xlu0 %v65, 14
    %v136 = vpop.permute.xlu0 %135
    %vm137 = vcmask 113664
    %v138 = vsel %vm137, %v132, %v134
    %v139 = vsel %vm137, %v134, %v136
    %v142 = vsel %vm76, %v127, %v132
    %143 = vrot.lane.b32.xlu0 %v41, 109
    %v144 = vpop.permute.xlu0 %143
    %145 = vrot.lane.b32.xlu0 %v49, 109
    %v146 = vpop.permute.xlu0 %145
    %147 = vrot.lane.b32.xlu0 %v48, 109
    %v148 = vpop.permute.xlu0 %147
    %vm149 = vcmask 891904
    %v150 = vsel %vm149, %v144, %v146
    %v151 = vsel %vm149, %v146, %v148
    %152 = vrot.lane.b32.xlu0 %v58, 13
    %v153 = vpop.permute.xlu0 %152
    %154 = vrot.lane.b32.xlu0 %v66, 13
    %v155 = vpop.permute.xlu0 %154
    %156 = vrot.lane.b32.xlu0 %v65, 13
    %v157 = vpop.permute.xlu0 %156
    %vm158 = vcmask 105472
    %v159 = vsel %vm158, %v153, %v155
    %v160 = vsel %vm158, %v155, %v157
    %v163 = vsel %vm76, %v148, %v153
    %164 = vrot.lane.b32.xlu0 %v41, 108
    %v165 = vpop.permute.xlu0 %164
    %166 = vrot.lane.b32.xlu0 %v49, 108
    %v167 = vpop.permute.xlu0 %166
    %168 = vrot.lane.b32.xlu0 %v48, 108
    %v169 = vpop.permute.xlu0 %168
    %vm170 = vcmask 883712
    %v171 = vsel %vm170, %v165, %v167
    %v172 = vsel %vm170, %v167, %v169
    %173 = vrot.lane.b32.xlu0 %v58, 12
    %v174 = vpop.permute.xlu0 %173
    %175 = vrot.lane.b32.xlu0 %v66, 12
    %v176 = vpop.permute.xlu0 %175
    %177 = vrot.lane.b32.xlu0 %v65, 12
    %v178 = vpop.permute.xlu0 %177
    %vm179 = vcmask 97280
    %v180 = vsel %vm179, %v174, %v176
    %v181 = vsel %vm179, %v176, %v178
    %v184 = vsel %vm76, %v169, %v174
    %185 = vrot.lane.b32.xlu0 %v41, 92
    %v186 = vpop.permute.xlu0 %185
    %187 = vrot.lane.b32.xlu0 %v49, 92
    %v188 = vpop.permute.xlu0 %187
    %189 = vrot.lane.b32.xlu0 %v48, 92
    %v190 = vpop.permute.xlu0 %189
    %vm191 = vcmask 752640
    %v192 = vsel %vm191, %v186, %v188
    %v193 = vsel %vm191, %v188, %v190
    %194 = vrot.lane.b32.xlu0 %v58, 124
    %v195 = vpop.permute.xlu0 %194
    %196 = vrot.lane.b32.xlu0 %v66, 124
    %v197 = vpop.permute.xlu0 %196
    %198 = vrot.lane.b32.xlu0 %v65, 124
    %v199 = vpop.permute.xlu0 %198
    %vm200 = vcmask 1014784
    %v201 = vsel %vm200, %v195, %v197
    %v202 = vsel %vm200, %v197, %v199
    %v205 = vsel %vm76, %v190, %v201
    %206 = vrot.lane.b32.xlu0 %v41, 91
    %v207 = vpop.permute.xlu0 %206
    %208 = vrot.lane.b32.xlu0 %v49, 91
    %v209 = vpop.permute.xlu0 %208
    %210 = vrot.lane.b32.xlu0 %v48, 91
    %v211 = vpop.permute.xlu0 %210
    %vm212 = vcmask 744448
    %v213 = vsel %vm212, %v207, %v209
    %v214 = vsel %vm212, %v209, %v211
    %215 = vrot.lane.b32.xlu0 %v58, 123
    %v216 = vpop.permute.xlu0 %215
    %217 = vrot.lane.b32.xlu0 %v66, 123
    %v218 = vpop.permute.xlu0 %217
    %219 = vrot.lane.b32.xlu0 %v65, 123
    %v220 = vpop.permute.xlu0 %219
    %vm221 = vcmask 1006592
    %v222 = vsel %vm221, %v216, %v218
    %v223 = vsel %vm221, %v218, %v220
    %v226 = vsel %vm76, %v211, %v222
    %227 = vrot.lane.b32.xlu0 %v41, 90
    %v228 = vpop.permute.xlu0 %227
    %229 = vrot.lane.b32.xlu0 %v49, 90
    %v230 = vpop.permute.xlu0 %229
    %231 = vrot.lane.b32.xlu0 %v48, 90
    %v232 = vpop.permute.xlu0 %231
    %vm233 = vcmask 736256
    %v234 = vsel %vm233, %v228, %v230
    %v235 = vsel %vm233, %v230, %v232
    %236 = vrot.lane.b32.xlu0 %v58, 122
    %v237 = vpop.permute.xlu0 %236
    %238 = vrot.lane.b32.xlu0 %v66, 122
    %v239 = vpop.permute.xlu0 %238
    %240 = vrot.lane.b32.xlu0 %v65, 122
    %v241 = vpop.permute.xlu0 %240
    %vm242 = vcmask 998400
    %v243 = vsel %vm242, %v237, %v239
    %v244 = vsel %vm242, %v239, %v241
    %v247 = vsel %vm76, %v232, %v243
    %v249 = vrot.slane %v87, 6
    %v250 = vrot.slane %v88, 6
    %v251 = vrot.slane %v100, 6
    %v252 = vrot.slane %v96, 6
    %v253 = vrot.slane %v97, 6
    %v255 = vrot.slane %v108, 4
    %v256 = vrot.slane %v109, 4
    %v257 = vrot.slane %v121, 4
    %v258 = vrot.slane %v117, 4
    %v259 = vrot.slane %v118, 4
    %v261 = vrot.slane %v129, 2
    %v262 = vrot.slane %v130, 2
    %v263 = vrot.slane %v142, 2
    %v264 = vrot.slane %v138, 2
    %v265 = vrot.slane %v139, 2
    %v267 = vrot.slane %v171, 6
    %v268 = vrot.slane %v172, 6
    %v269 = vrot.slane %v184, 6
    %v270 = vrot.slane %v180, 6
    %v271 = vrot.slane %v181, 6
    %v273 = vrot.slane %v192, 4
    %v274 = vrot.slane %v193, 4
    %v275 = vrot.slane %v205, 4
    %v276 = vrot.slane %v202, 4
    %v277 = vrot.slane %v199, 4
    %v279 = vrot.slane %v213, 2
    %v280 = vrot.slane %v214, 2
    %v281 = vrot.slane %v226, 2
    %v282 = vrot.slane %v223, 2
    %v283 = vrot.slane %v220, 2
    %vm284 = vcmask 1041408
    %v287 = vsel %vm284, %v41, %v249
    %v290 = vsel %vm284, %v49, %v250
    %v292 = vsel %vm284, %v79, %v251
    %v295 = vsel %vm284, %v74, %v252
    %v298 = vsel %vm284, %v75, %v253
    %vm299 = vcmask 1043456
    %v301 = vsel %vm299, %v287, %v255
    %v303 = vsel %vm299, %v290, %v256
    %v305 = vsel %vm299, %v292, %v257
    %v307 = vsel %vm299, %v295, %v258
    %v309 = vsel %vm299, %v298, %v259
    %vm310 = vcmask 1045504
    %v312 = vsel %vm310, %v301, %v261
    %v315 = vsel %vm310, %v303, %v262
    %v318 = vsel %vm310, %v305, %v263
    %v321 = vsel %vm310, %v307, %v264
    %v324 = vsel %vm310, %v309, %v265
    %v328 = vsel %vm284, %v150, %v267
    %v331 = vsel %vm284, %v151, %v268
    %v333 = vsel %vm284, %v163, %v269
    %v336 = vsel %vm284, %v159, %v270
    %v339 = vsel %vm284, %v160, %v271
    %v341 = vsel %vm299, %v328, %v273
    %v343 = vsel %vm299, %v331, %v274
    %v345 = vsel %vm299, %v333, %v275
    %v347 = vsel %vm299, %v336, %v276
    %v349 = vsel %vm299, %v339, %v277
    %v351 = vsel %vm310, %v341, %v279
    %v354 = vsel %vm310, %v343, %v280
    %v357 = vsel %vm310, %v345, %v281
    %v360 = vsel %vm310, %v347, %v282
    %v363 = vsel %vm310, %v349, %v283
    %v365 = vld [vmem:[%s1] sm:$0xf]
    %v366 = vld [vmem:[%s2] sm:$0xff]
    %368 = vset.pattern.permute.xlu0 0
    %369 = vperm.xlu0 %368, %v366
    %v370 = vpop.permute.xlu0 %369
    %vm372 = vcmask 293888
    %v374 = vsel %vm372, %v365, 0
    %v377 = vsel %vm284, %v234, 0
    %v380 = vsel %vm284, %v235, 0
    %v382 = vsel %vm284, %v247, 0
    %v385 = vsel %vm284, %v244, 0
    %v388 = vsel %vm284, %v241, 0
    %390 = vmatprep.subr.bf16.mxu0 %v315
    %391 = vmatpush1.bf16.msra.mxu0 %v312
    %392 = vmatprep.subr.bf16.mxu0 %v354
    %393 = vmatpush1.bf16.msra.mxu0 %v351
    %394 = vmatprep.subr.bf16.mxu0 %v380
    %395 = vmatpush1.bf16.msra.mxu0 %v377
    %396 = vmatprep.subr.bf16.mxu0 0
    %397 = vmatpush1.bf16.msra.mxu0 0
    %398 = vmatprep.subr.bf16.mxu0 0
    %399 = vmatpush1.bf16.msra.mxu0 0
    %400 = vmatprep.subr.bf16.mxu0 0
    %401 = vmatpush1.bf16.msra.mxu0 0
    %402 = vmatprep.subr.bf16.mxu0 0
    %403 = vmatpush1.bf16.msra.mxu0 0
    %404 = vmatprep.subr.bf16.mxu0 0
    %405 = vmatpush1.bf16.msra.mxu0 0
    %406 = vmatprep.subr.bf16.mxu0 0
    %407 = vmatpush1.bf16.msra.mxu0 0
    %408 = vmatprep.subr.bf16.mxu0 0
    %409 = vmatpush1.bf16.msra.mxu0 0
    %410 = vmatprep.subr.bf16.mxu0 0
    %411 = vmatpush1.bf16.msra.mxu0 0
    %412 = vmatprep.subr.bf16.mxu0 0
    %413 = vmatpush1.bf16.msra.mxu0 0
    %414 = vmatprep.subr.bf16.mxu0 0
    %415 = vmatpush1.bf16.msra.mxu0 0
    %416 = vmatprep.subr.bf16.mxu0 0
    %417 = vmatpush1.bf16.msra.mxu0 0
    %418 = vmatprep.subr.bf16.mxu0 0
    %419 = vmatpush1.bf16.msra.mxu0 0
    %420 = vmatprep.subr.bf16.mxu0 0
    %421 = vmatpush1.bf16.msra.mxu0 0
    %422 = vmatprep.mubr.bf16.mxu0 0
    %423 = vmatmul.mubr.bf16.gmra.mrb[0].mxu0 %v374
    %v424 = vpop.f32.mrb[0].mxu0
    %v425 = vadd.f32 %v370, %v424
    %v426 = vpop.f32.mrb[0].mxu0
    %v427 = vadd.f32 %v370, %v426
    %v428 = vpop.f32.mrb[0].mxu0
    %v429 = vpop.f32.mrb[0].mxu0
    %430 = vdwg.mxu0
    %431 = vmatprep.subr.bf16.mxu0 %v321
    %432 = vmatpush1.bf16.msra.mxu0 %v318
    %433 = vmatprep.subr.bf16.mxu0 %v360
    %434 = vmatpush1.bf16.msra.mxu0 %v357
    %435 = vmatprep.subr.bf16.mxu0 %v385
    %436 = vmatpush1.bf16.msra.mxu0 %v382
    %437 = vmatprep.subr.bf16.mxu0 0
    %438 = vmatpush1.bf16.msra.mxu0 0
    %439 = vmatprep.subr.bf16.mxu0 0
    %440 = vmatpush1.bf16.msra.mxu0 0
    %441 = vmatprep.subr.bf16.mxu0 0
    %442 = vmatpush1.bf16.msra.mxu0 0
    %443 = vmatprep.subr.bf16.mxu0 0
    %444 = vmatpush1.bf16.msra.mxu0 0
    %445 = vmatprep.subr.bf16.mxu0 0
    %446 = vmatpush1.bf16.msra.mxu0 0
    %447 = vmatprep.subr.bf16.mxu0 0
    %448 = vmatpush1.bf16.msra.mxu0 0
    %449 = vmatprep.subr.bf16.mxu0 0
    %450 = vmatpush1.bf16.msra.mxu0 0
    %451 = vmatprep.subr.bf16.mxu0 0
    %452 = vmatpush1.bf16.msra.mxu0 0
    %453 = vmatprep.subr.bf16.mxu0 0
    %454 = vmatpush1.bf16.msra.mxu0 0
    %455 = vmatprep.subr.bf16.mxu0 0
    %456 = vmatpush1.bf16.msra.mxu0 0
    %457 = vmatprep.subr.bf16.mxu0 0
    %458 = vmatpush1.bf16.msra.mxu0 0
    %459 = vmatprep.subr.bf16.mxu0 0
    %460 = vmatpush1.bf16.msra.mxu0 0
    %461 = vmatprep.subr.bf16.mxu0 0
    %462 = vmatpush1.bf16.msra.mxu0 0
    %463 = vmatprep.mubr.bf16.mxu0 0
    %464 = vmatmul.mubr.bf16.gmra.mrb[0].mxu0 %v374
    %v465 = vpop.f32.mrb[0].mxu0
    %v466 = vadd.f32 %v370, %v465
    %v467 = vpop.f32.mrb[0].mxu0
    %v468 = vadd.f32 %v370, %v467
    %v469 = vpop.f32.mrb[0].mxu0
    %v470 = vpop.f32.mrb[0].mxu0
    %471 = vdwg.mxu0
    %472 = vmatprep.subr.bf16.mxu0 0
    %473 = vmatpush1.bf16.msra.mxu0 %v324
    %474 = vmatprep.subr.bf16.mxu0 0
    %475 = vmatpush1.bf16.msra.mxu0 %v363
    %476 = vmatprep.subr.bf16.mxu0 0
    %477 = vmatpush1.bf16.msra.mxu0 %v388
    %478 = vmatprep.subr.bf16.mxu0 0
    %479 = vmatpush1.bf16.msra.mxu0 0
    %480 = vmatprep.subr.bf16.mxu0 0
    %481 = vmatpush1.bf16.msra.mxu0 0
    %482 = vmatprep.subr.bf16.mxu0 0
    %483 = vmatpush1.bf16.msra.mxu0 0
    %484 = vmatprep.subr.bf16.mxu0 0
    %485 = vmatpush1.bf16.msra.mxu0 0
    %486 = vmatprep.subr.bf16.mxu0 0
    %487 = vmatpush1.bf16.msra.mxu0 0
    %488 = vmatprep.subr.bf16.mxu0 0
    %489 = vmatpush1.bf16.msra.mxu0 0
    %490 = vmatprep.subr.bf16.mxu0 0
    %491 = vmatpush1.bf16.msra.mxu0 0
    %492 = vmatprep.subr.bf16.mxu0 0
    %493 = vmatpush1.bf16.msra.mxu0 0
    %494 = vmatprep.subr.bf16.mxu0 0
    %495 = vmatpush1.bf16.msra.mxu0 0
    %496 = vmatprep.subr.bf16.mxu0 0
    %497 = vmatpush1.bf16.msra.mxu0 0
    %498 = vmatprep.subr.bf16.mxu0 0
    %499 = vmatpush1.bf16.msra.mxu0 0
    %500 = vmatprep.subr.bf16.mxu0 0
    %501 = vmatpush1.bf16.msra.mxu0 0
    %502 = vmatprep.subr.bf16.mxu0 0
    %503 = vmatpush1.bf16.msra.mxu0 0
    %504 = vmatprep.mubr.bf16.mxu0 0
    %505 = vmatmul.mubr.bf16.gmra.mrb[0].mxu0 %v374
    %v506 = vpop.f32.mrb[0].mxu0
    %v507 = vadd.f32 %v370, %v506
    %v508 = vpop.f32.mrb[0].mxu0
    %v509 = vpop.f32.mrb[0].mxu0
    %v510 = vpop.f32.mrb[0].mxu0
    %511 = vdwg.mxu0
    %512 = vst [vmem:[#allocation5] sm:$0xff] %v425
    %513 = vst [vmem:[#allocation5 + $0x8] sm:$0xff] %v427
    %514 = vst.msk [vmem:[#allocation5 + $0x10] sm:$0xff] %vm76, %v466
    %518 = vrot.lane.b32.xlu0 %v466, 96
    %v519 = vpop.permute.xlu0 %518
    %520 = vrot.lane.b32.xlu0 %v468, 96
    %v521 = vpop.permute.xlu0 %520
    %522 = vrot.lane.b32.xlu0 %v507, 96
    %v523 = vpop.permute.xlu0 %522
    %vm524 = vcmask 785408
    %v525 = vsel %vm524, %v519, %v521
    %v526 = vsel %vm524, %v521, %v523
    %s530 = scalar_lea.vmem [#allocation5], 24
    %531 = vst [vmem:[%s530] sm:$0xff] %v525
    %532 = vst [vmem:[%s530 + $0x8] sm:$0xff] %v526
    %533 = vst.msk [vmem:[%s530 + $0x10] sm:$0xff] %vm76, %v523
    // Predicated region
    $region18: #{tpu_custom_call.1} parent=1 // pred_check
      _
    $region19: #{tpu_custom_call.1} parent=1 // pred_check_branch
      %535 = sbr.rel (0) target = $region21
    $region20: #{tpu_custom_call.1} parent=1 // pred_region
      %s537 = ssub.s32 768, 768
      %538 = vsyncadd [#allocation4], %s537
      %s539 = sshll.u32 [#allocation5], 4
      %s540 = int_to_ptr.vmem [resolvable:$true] %s539
      %545 = dma.vmem_to_hbm [thread:$0]  %s540, 768, %s3, [#allocation4], 384, 384, 24
    $region21: #{tpu_custom_call.1} parent=1 // pred_fallthru
      _
    // Predicated region
    $region22: #{tpu_custom_call.1} parent=1 // pred_check
      _
    $region23: #{tpu_custom_call.1} parent=1 // pred_check_branch
      %547 = sbr.rel (0) target = $region25
    $region24: #{tpu_custom_call.1} parent=1 // pred_region
      %548 = dma.done [#allocation4], 768
    $region25: #{tpu_custom_call.1} parent=1 // pred_fallthru
      _
    %549 = vsyncpa [#allocation3], 1
    %550 = vsyncpa [#allocation4], 1

</llo_original>
